<compile_context>
chip_gen: v7x
topology: tpu7x:2x2x1
jax: 0.10.0
libtpu: 0.0.40
codegen_flags: <defaults>
</compile_context>

<pallas_src>
import functools

import jax
import jax.numpy as jnp
from jax.experimental import pallas as pl
from jax.experimental.pallas import tpu as pltpu

EPS = 1e-5


# ----------------------------------------------------------------------------
# Pass 1: tiled propagation  h = relu(A_hat @ (x @ W_conv) + b_conv)
#         plus per-row-tile column (sum, sum-of-squares) partials for BatchNorm.
# Grid: (i over output row tiles [parallel], k over contraction tiles [arbitrary])
# ----------------------------------------------------------------------------
def conv_stats_kernel(a_ref, x_ref, wc_ref, bc_ref, h_ref, stats_ref, acc_ref):
    k = pl.program_id(1)

    @pl.when(k == 0)
    def _init():
        acc_ref[...] = jnp.zeros_like(acc_ref)

    # Feature transform for this K tile: [TK, Fin] @ [Fin, Fp]  (f32 MXU)
    xw = jnp.dot(x_ref[...], wc_ref[...], preferred_element_type=jnp.float32)
    # Propagate through the bf16-stored normalized adjacency tile, f32 accumulate.
    # TODO(synk): drop xw to bf16 here for full-rate bf16 MXU if ~1e-3 relative
    # error is acceptable; bf16 storage of A_hat already halves HBM/VMEM traffic.
    acc_ref[...] += jnp.dot(a_ref[...].astype(jnp.float32), xw,
                            preferred_element_type=jnp.float32)

    @pl.when(k == pl.num_programs(1) - 1)
    def _finalize():
        h = jnp.maximum(acc_ref[...] + bc_ref[...], 0.0)
        h_ref[...] = h
        # Single-pass BatchNorm sufficient statistics for this row tile.
        stats_ref[0, 0:1, :] = jnp.sum(h, axis=0, keepdims=True)
        stats_ref[0, 1:2, :] = jnp.sum(h * h, axis=0, keepdims=True)


# ----------------------------------------------------------------------------
# Pass 2: finalize BatchNorm (folded affine) + residual Linear + add.
# Grid: (i over row tiles [parallel])
# ----------------------------------------------------------------------------
def bn_residual_kernel(stats_ref, h_ref, x_ref, wr_ref, br_ref, g_ref, b_ref,
                       out_ref, *, inv_n):
    totals = jnp.sum(stats_ref[...], axis=0)                 # [2, Fp]
    mean = totals[0:1, :] * inv_n                            # E[h]
    var = jnp.maximum(totals[1:2, :] * inv_n - mean * mean, 0.0)   # E[h^2]-E[h]^2
    # Folded affine: out = scale * h + shift   (one FMA per element)
    scale = g_ref[...] * jax.lax.rsqrt(var + EPS)
    shift = b_ref[...] - mean * scale
    res = jnp.dot(x_ref[...], wr_ref[...],
                  preferred_element_type=jnp.float32) + br_ref[...]
    out_ref[...] = h_ref[...] * scale + shift + res


def _pick_tile(n, target):
    """Largest divisor of n that is <= target and a multiple of 8 (or n itself)."""
    for d in range(min(n, target), 0, -1):
        if n % d == 0 and (d % 8 == 0 or d == n):
            return d
    return n


def gcn_forward(x, a_hat, w_conv, b_conv, gamma, beta, w_res, b_res,
                *, tm=256, tk=512):
    n, fin = x.shape
    f = w_conv.shape[1]
    f_pad = ((f + 127) // 128) * 128          # lane-dense feature dim
    pad = f_pad - f

    def padf(p):
        return jnp.pad(p, ((0, 0), (0, pad))) if pad else p

    wc, bc = padf(w_conv), padf(b_conv)
    wr, br = padf(w_res), padf(b_res)
    g, b = padf(gamma), padf(beta)

    # TODO(synk): for N not divisible by a convenient tile, pad A_hat/x with zero
    # rows and mask the padded rows out of the BatchNorm statistics.
    tm = _pick_tile(n, tm)
    tk = _pick_tile(n, tk)
    num_i, num_k = n // tm, n // tk

    # Working set (double-buffered A_hat bf16 tiles + x tiles + acc + h) stays
    # well under 32 MiB for the default 256x512 tiles -> safe on v5e/v6e/v7x.
    vmem_limit = 32 * 1024 * 1024

    h, stats = pl.pallas_call(
        conv_stats_kernel,
        grid=(num_i, num_k),
        in_specs=[
            pl.BlockSpec((tm, tk), lambda i, k: (i, k)),       # A_hat tile (bf16)
            pl.BlockSpec((tk, fin), lambda i, k: (k, 0)),      # x rows for K tile
            pl.BlockSpec((fin, f_pad), lambda i, k: (0, 0)),   # W_conv (whole)
            pl.BlockSpec((1, f_pad), lambda i, k: (0, 0)),     # b_conv (whole)
        ],
        out_specs=[
            pl.BlockSpec((tm, f_pad), lambda i, k: (i, 0)),        # h
            pl.BlockSpec((1, 2, f_pad), lambda i, k: (i, 0, 0)),   # per-tile stats
        ],
        out_shape=[
            jax.ShapeDtypeStruct((n, f_pad), jnp.float32),
            jax.ShapeDtypeStruct((num_i, 2, f_pad), jnp.float32),
        ],
        scratch_shapes=[pltpu.VMEM((tm, f_pad), jnp.float32)],
        compiler_params=pltpu.CompilerParams(
            dimension_semantics=("parallel", "arbitrary"),
            vmem_limit_bytes=vmem_limit),
    )(a_hat, x, wc, bc)

    out_pad = pl.pallas_call(
        functools.partial(bn_residual_kernel, inv_n=1.0 / n),
        grid=(num_i,),
        in_specs=[
            pl.BlockSpec((num_i, 2, f_pad), lambda i: (0, 0, 0)),  # stats (whole)
            pl.BlockSpec((tm, f_pad), lambda i: (i, 0)),           # h row tile
            pl.BlockSpec((tm, fin), lambda i: (i, 0)),             # x rows (residual)
            pl.BlockSpec((fin, f_pad), lambda i: (0, 0)),          # W_res (whole)
            pl.BlockSpec((1, f_pad), lambda i: (0, 0)),            # b_res
            pl.BlockSpec((1, f_pad), lambda i: (0, 0)),            # gamma
            pl.BlockSpec((1, f_pad), lambda i: (0, 0)),            # beta
        ],
        out_specs=pl.BlockSpec((tm, f_pad), lambda i: (i, 0)),
        out_shape=jax.ShapeDtypeStruct((n, f_pad), jnp.float32),
        compiler_params=pltpu.CompilerParams(
            dimension_semantics=("parallel",),
            vmem_limit_bytes=vmem_limit),
    )(stats, h, x, wr, br, g, b)

    return out_pad[:, :f]


def build_norm_adj(edge_index, num_nodes, dtype=jnp.bfloat16):
    """Dense D^-1/2 (A + I) D^-1/2 (torch_geometric gcn_norm), stored narrow."""
    src, dst = edge_index[0], edge_index[1]
    loops = jnp.arange(num_nodes, dtype=src.dtype)
    src = jnp.concatenate([src, loops])
    dst = jnp.concatenate([dst, loops])
    a = jnp.zeros((num_nodes, num_nodes), jnp.float32).at[dst, src].add(1.0)
    deg = a.sum(axis=1)
    dinv = jnp.where(deg > 0, 1.0 / jnp.sqrt(deg), 0.0)
    return (a * dinv[:, None] * dinv[None, :]).astype(dtype)
    # TODO(synk): for realistic sparse graphs, switch to a blocked-sparse layout
    # with PrefetchScalarGridSpec so only nonzero (TM, TK) blocks are DMA'd.


def gcn_ref(x, a_hat_f32, w_conv, b_conv, gamma, beta, w_res, b_res):
    conv = a_hat_f32 @ (x @ w_conv) + b_conv
    h = jnp.maximum(conv, 0.0)
    mean = h.mean(axis=0, keepdims=True)
    var = ((h - mean) ** 2).mean(axis=0, keepdims=True)
    h_bn = gamma * (h - mean) / jnp.sqrt(var + EPS) + beta
    return h_bn + (x @ w_res + b_res)


if __name__ == "__main__":
    num_nodes, in_feats, out_feats, num_edges = 16, 8, 32, 48

    key = jax.random.PRNGKey(0)
    kx, ke1, ke2, kwc, kwr, kbr, kg, kb = jax.random.split(key, 8)

    x = jax.random.normal(kx, (num_nodes, in_feats), jnp.float32)
    edge_index = jnp.stack([
        jax.random.randint(ke1, (num_edges,), 0, num_nodes),
        jax.random.randint(ke2, (num_edges,), 0, num_nodes),
    ]).astype(jnp.int32)

    w_conv = jax.random.normal(kwc, (in_feats, out_feats), jnp.float32) * 0.2
    b_conv = jnp.zeros((1, out_feats), jnp.float32)
    gamma = 1.0 + 0.1 * jax.random.normal(kg, (1, out_feats), jnp.float32)
    beta = 0.1 * jax.random.normal(kb, (1, out_feats), jnp.float32)
    w_res = jax.random.normal(kwr, (in_feats, out_feats), jnp.float32) * 0.2
    b_res = 0.1 * jax.random.normal(kbr, (1, out_feats), jnp.float32)

    a_hat = build_norm_adj(edge_index, num_nodes)          # bf16 storage

    out = gcn_forward(x, a_hat, w_conv, b_conv, gamma, beta, w_res, b_res)
    out = jax.block_until_ready(out)

    ref = gcn_ref(x, a_hat.astype(jnp.float32), w_conv, b_conv,
                  gamma, beta, w_res, b_res)
    assert out.shape == (num_nodes, out_feats)
    assert jnp.allclose(out, ref, atol=1e-3, rtol=1e-3), \
        float(jnp.abs(out - ref).max())

    print("KERNEL_OK")
</pallas_src>

<mosaic_0001>
module attributes {stable_mosaic.version = 11 : i64} {
  func.func @conv_stats_kernel(%arg0: i32, %arg1: i32, %arg2: memref<16x16xbf16, #tpu.memory_space<vmem>>, %arg3: memref<16x8xf32, #tpu.memory_space<vmem>>, %arg4: memref<8x128xf32, #tpu.memory_space<vmem>>, %arg5: memref<1x128xf32, #tpu.memory_space<vmem>>, %arg6: memref<16x128xf32, #tpu.memory_space<vmem>>, %arg7: memref<1x2x128xf32, #tpu.memory_space<vmem>>, %arg8: memref<16x128xf32, #tpu.memory_space<vmem>>) attributes {dimension_semantics = [#tpu.dimension_semantics<parallel>, #tpu.dimension_semantics<arbitrary>], iteration_bounds = array<i64: 1, 1>, scalar_prefetch = 0 : i64, scratch_operands = 1 : i64, tpu.core_type = #tpu.core_type<tc>, window_params = [{transform_indices = @transform_0, window_bounds = array<i64: 16, 16>}, {transform_indices = @transform_1, window_bounds = array<i64: 16, 8>}, {pipeline_mode = #tpu.pipeline_mode<synchronous>, transform_indices = @transform_2, window_bounds = array<i64: 8, 128>}, {pipeline_mode = #tpu.pipeline_mode<synchronous>, transform_indices = @transform_3, window_bounds = array<i64: 1, 128>}, {transform_indices = @transform_4, window_bounds = array<i64: 16, 128>}, {transform_indices = @transform_5, window_bounds = array<i64: 1, 2, 128>}]} {
    %c0_i32 = arith.constant 0 : i32
    %0 = arith.cmpi eq, %arg1, %c0_i32 : i32
    %1 = arith.extui %0 : i1 to i32
    %c0_i32_0 = arith.constant 0 : i32
    %2 = arith.cmpi ne, %1, %c0_i32_0 : i32
    scf.if %2 {
      %cst_13 = arith.constant 0.000000e+00 : f32
      %15 = vector.broadcast %cst_13 : f32 to vector<16x128xf32>
      %c0_14 = arith.constant 0 : index
      %c0_15 = arith.constant 0 : index
      %16 = vector.load %arg8[%c0_14, %c0_15] : memref<16x128xf32, #tpu.memory_space<vmem>>, vector<16x128xf32>
      tpu.vector_store %arg8[%c0_14, %c0_15], %15 {strides = array<i32>} : memref<16x128xf32, #tpu.memory_space<vmem>>, vector<16x128xf32>,
    } else {
    }
    %c0 = arith.constant 0 : index
    %c0_1 = arith.constant 0 : index
    %3 = vector.load %arg3[%c0, %c0_1] : memref<16x8xf32, #tpu.memory_space<vmem>>, vector<16x8xf32>
    %c0_2 = arith.constant 0 : index
    %c0_3 = arith.constant 0 : index
    %4 = vector.load %arg4[%c0_2, %c0_3] : memref<8x128xf32, #tpu.memory_space<vmem>>, vector<8x128xf32>
    %cst = arith.constant dense<0.000000e+00> : vector<16x128xf32>
    %5 = tpu.matmul %3, %4, %cst {dimension_numbers = #tpu.dot_dimension_numbers<[1], [0], [0], [1], [0, 0, 1, 1], [], []>} : vector<16x8xf32>, vector<8x128xf32>, vector<16x128xf32> -> vector<16x128xf32>
    %c0_4 = arith.constant 0 : index
    %c0_5 = arith.constant 0 : index
    %6 = vector.load %arg8[%c0_4, %c0_5] : memref<16x128xf32, #tpu.memory_space<vmem>>, vector<16x128xf32>
    %c0_6 = arith.constant 0 : index
    %c0_7 = arith.constant 0 : index
    %7 = vector.load %arg2[%c0_6, %c0_7] : memref<16x16xbf16, #tpu.memory_space<vmem>>, vector<16x16xbf16>
    %8 = arith.extf %7 : vector<16x16xbf16> to vector<16x16xf32>
    %cst_8 = arith.constant dense<0.000000e+00> : vector<16x128xf32>
    %9 = tpu.matmul %8, %5, %cst_8 {dimension_numbers = #tpu.dot_dimension_numbers<[1], [0], [0], [1], [0, 0, 1, 1], [], []>} : vector<16x16xf32>, vector<16x128xf32>, vector<16x128xf32> -> vector<16x128xf32>
    %10 = arith.addf %6, %9 : vector<16x128xf32>
    %c0_9 = arith.constant 0 : index
    %c0_10 = arith.constant 0 : index
    %11 = vector.load %arg8[%c0_9, %c0_10] : memref<16x128xf32, #tpu.memory_space<vmem>>, vector<16x128xf32>
    tpu.vector_store %arg8[%c0_9, %c0_10], %10 {strides = array<i32>} : memref<16x128xf32, #tpu.memory_space<vmem>>, vector<16x128xf32>,
    %c0_i32_11 = arith.constant 0 : i32
    %12 = arith.cmpi eq, %arg1, %c0_i32_11 : i32
    %13 = arith.extui %12 : i1 to i32
    %c0_i32_12 = arith.constant 0 : i32
    %14 = arith.cmpi ne, %13, %c0_i32_12 : i32
    scf.if %14 {
      %c0_13 = arith.constant 0 : index
      %c0_14 = arith.constant 0 : index
      %15 = vector.load %arg8[%c0_13, %c0_14] : memref<16x128xf32, #tpu.memory_space<vmem>>, vector<16x128xf32>
      %c0_15 = arith.constant 0 : index
      %c0_16 = arith.constant 0 : index
      %16 = vector.load %arg5[%c0_15, %c0_16] : memref<1x128xf32, #tpu.memory_space<vmem>>, vector<1x128xf32>
      %17 = vector.broadcast %16 : vector<1x128xf32> to vector<16x128xf32>
      %18 = arith.addf %15, %17 : vector<16x128xf32>
      %cst_17 = arith.constant 0.000000e+00 : f32
      %19 = vector.broadcast %cst_17 : f32 to vector<16x128xf32>
      %20 = arith.maximumf %18, %19 : vector<16x128xf32>
      %c0_18 = arith.constant 0 : index
      %c0_19 = arith.constant 0 : index
      %21 = vector.load %arg6[%c0_18, %c0_19] : memref<16x128xf32, #tpu.memory_space<vmem>>, vector<16x128xf32>
      tpu.vector_store %arg6[%c0_18, %c0_19], %20 {strides = array<i32>} : memref<16x128xf32, #tpu.memory_space<vmem>>, vector<16x128xf32>,
      %cst_20 = arith.constant dense<0.000000e+00> : vector<128xf32>
      %22 = vector.multi_reduction <add>, %20, %cst_20 [0] : vector<16x128xf32> to vector<128xf32>
      %23 = vector.shape_cast %22 : vector<128xf32> to vector<1x128xf32>
      %c0_21 = arith.constant 0 : index
      %c0_22 = arith.constant 0 : index
      %c0_23 = arith.constant 0 : index
      %24 = vector.load %arg7[%c0_21, %c0_22, %c0_23] : memref<1x2x128xf32, #tpu.memory_space<vmem>>, vector<1x1x128xf32>
      %25 = vector.shape_cast %24 : vector<1x1x128xf32> to vector<1x128xf32>
      %26 = vector.shape_cast %23 : vector<1x128xf32> to vector<1x1x128xf32>
      tpu.vector_store %arg7[%c0_21, %c0_22, %c0_23], %26 {strides = array<i32>} : memref<1x2x128xf32, #tpu.memory_space<vmem>>, vector<1x1x128xf32>,
      %27 = arith.mulf %20, %20 : vector<16x128xf32>
      %cst_24 = arith.constant dense<0.000000e+00> : vector<128xf32>
      %28 = vector.multi_reduction <add>, %27, %cst_24 [0] : vector<16x128xf32> to vector<128xf32>
      %29 = vector.shape_cast %28 : vector<128xf32> to vector<1x128xf32>
      %c0_25 = arith.constant 0 : index
      %c1 = arith.constant 1 : index
      %c0_26 = arith.constant 0 : index
      %30 = vector.load %arg7[%c0_25, %c1, %c0_26] : memref<1x2x128xf32, #tpu.memory_space<vmem>>, vector<1x1x128xf32>
      %31 = vector.shape_cast %30 : vector<1x1x128xf32> to vector<1x128xf32>
      %32 = vector.shape_cast %29 : vector<1x128xf32> to vector<1x1x128xf32>
      tpu.vector_store %arg7[%c0_25, %c1, %c0_26], %32 {strides = array<i32>} : memref<1x2x128xf32, #tpu.memory_space<vmem>>, vector<1x1x128xf32>,
    } else {
    }
    return
  }
  func.func @transform_0(%arg0: i32, %arg1: i32) -> (i32, i32) {
    %c0_i32 = arith.constant 0 : i32
    return %arg0, %arg1 : i32, i32
  }
  func.func @transform_1(%arg0: i32, %arg1: i32) -> (i32, i32) {
    %c0_i32 = arith.constant 0 : i32
    %c0_i32_0 = arith.constant 0 : i32
    return %arg1, %c0_i32 : i32, i32
  }
  func.func @transform_2(%arg0: i32, %arg1: i32) -> (i32, i32) {
    %c0_i32 = arith.constant 0 : i32
    %c0_i32_0 = arith.constant 0 : i32
    %c0_i32_1 = arith.constant 0 : i32
    return %c0_i32, %c0_i32_0 : i32, i32
  }
  func.func @transform_3(%arg0: i32, %arg1: i32) -> (i32, i32) {
    %c0_i32 = arith.constant 0 : i32
    %c0_i32_0 = arith.constant 0 : i32
    %c0_i32_1 = arith.constant 0 : i32
    return %c0_i32, %c0_i32_0 : i32, i32
  }
  func.func @transform_4(%arg0: i32, %arg1: i32) -> (i32, i32) {
    %c0_i32 = arith.constant 0 : i32
    %c0_i32_0 = arith.constant 0 : i32
    return %arg0, %c0_i32 : i32, i32
  }
  func.func @transform_5(%arg0: i32, %arg1: i32) -> (i32, i32, i32) {
    %c0_i32 = arith.constant 0 : i32
    %c0_i32_0 = arith.constant 0 : i32
    %c0_i32_1 = arith.constant 0 : i32
    return %arg0, %c0_i32, %c0_i32_0 : i32, i32, i32
  }
}

</mosaic_0001>

<llo_original>
// kernel: tpu_custom_call.1
$region0: #{tpu_custom_call.1}
  #allocation0 [shape = 'u32[]', space=smem, size = 0x4, offset = 0x4, fixed_abs, tag = 'smem constant byte address 0x4 - core index']
  #allocation1 [shape = 'u32[144,128]{1,0:T(1,128)}', space=vmem, size = 0x12000, scoped, tag = 'internal scratch']
  #allocation2 [shape = 'f32[16,128]{1,0:T(8,128)}', space=vmem, size = 0x2000, scoped, tag = 'scratch operand']
  %s0 = inlined_call_operand.vmem [shape: bf16[16,16], index: 0, kind: input, shape index: {}]
  %s1 = inlined_call_operand.vmem [shape: f32[16,8], index: 1, kind: input, shape index: {}]
  %s2 = inlined_call_operand.vmem [shape: f32[8,128], index: 2, kind: input, shape index: {}]
  %s3 = inlined_call_operand.vmem [shape: f32[1,128], index: 3, kind: input, shape index: {}]
  %s4 = inlined_call_operand.hbm [shape: f32[16,128], index: 4, kind: output, shape index: {0}]
  %s5 = inlined_call_operand.hbm [shape: f32[1,2,128], index: 5, kind: output, shape index: {1}]
  %6 = xla_tuple %s4, %s5
  %s7 = sld [smem:[#allocation0]]
  $region42: #{tpu_custom_call.1} parent=0
    _
  %s9 = ssub.s32 1, %s7
  %s10 = scalar_select 0, %s9, %s7
  $region1: #{tpu_custom_call.1} parent=0
    #allocation3 [shape = 'u8[8192]{0}', space=vmem, size = 0x2000, scoped, tag = 'output window, operand 0, single buffered']
    #allocation4 [shape = 's32[1]{0}', space=sflag, size = 0x4, scoped, tag = 'scoped memory for tpu_custom_call.1']
    #allocation5 [shape = 'u8[1024]{0}', space=vmem, size = 0x400, scoped, tag = 'output window, operand 1, single buffered']
    #allocation6 [shape = 's32[1]{0}', space=sflag, size = 0x4, scoped, tag = 'scoped memory for tpu_custom_call.1']
    %11 = vsyncpa [#allocation4], 0
    %12 = vsyncpa [#allocation6], 0
    // Predicated region
    $region2: #{tpu_custom_call.1} parent=1 // pred_check
      _
    $region3: #{tpu_custom_call.1} parent=1 // pred_check_branch
      %14 = sbr.rel (0) target = $region5
    $region4: #{tpu_custom_call.1} parent=1 // pred_region
      _
    $region5: #{tpu_custom_call.1} parent=1 // pred_fallthru
      _
    // Predicated region
    $region6: #{tpu_custom_call.1} parent=1 // pred_check
      _
    $region7: #{tpu_custom_call.1} parent=1 // pred_check_branch
      %16 = sbr.rel (0) target = $region9
    $region8: #{tpu_custom_call.1} parent=1 // pred_region
      _
    $region9: #{tpu_custom_call.1} parent=1 // pred_fallthru
      _
    // Predicated region
    $region10: #{tpu_custom_call.1} parent=1 // pred_check
      _
    $region11: #{tpu_custom_call.1} parent=1 // pred_check_branch
      %18 = sbr.rel (0) target = $region13
    $region12: #{tpu_custom_call.1} parent=1 // pred_region
      _
    $region13: #{tpu_custom_call.1} parent=1 // pred_fallthru
      _
    // Predicated region
    $region14: #{tpu_custom_call.1} parent=1 // pred_check
      _
    $region15: #{tpu_custom_call.1} parent=1 // pred_check_branch
      %20 = sbr.rel (0) target = $region17
    $region16: #{tpu_custom_call.1} parent=1 // pred_region
      _
    $region17: #{tpu_custom_call.1} parent=1 // pred_fallthru
      _
    %p21 = scmp.eq.s32.totalorder 0, 0
    // Predicated region
    $region18: #{tpu_custom_call.1} parent=1 // pred_check
      %p22 = pneg %p21
    $region19: #{tpu_custom_call.1} parent=1 // pred_check_branch
      %24 = sbr.rel (%p22) target = $region21
    $region20: #{tpu_custom_call.1} parent=1 // pred_region
      %25 = vst [vmem:[#allocation2] sm:$0xff] 0.0
      %26 = vst [vmem:[#allocation2 + $0x8] sm:$0xff] 0.0
    $region21: #{tpu_custom_call.1} parent=1 // pred_fallthru
      _
    %v27 = vld [vmem:[%s1] sm:$0xff]
    %v28 = vld [vmem:[%s1 + $0x8] sm:$0xff]
    %v29 = vld [vmem:[%s2] sm:$0xff]
    %vm30 = vcmask 64512
    %v32 = vsel %vm30, %v27, 0
    %v35 = vsel %vm30, %v28, 0
    %37 = vmatprep.subr.mxu0 0.0
    %38 = vmatpush1.msra.mxu0 %v29
    %39 = vmatprep.subr.mxu0 0.0
    %40 = vmatpush1.msra.mxu0 0.0
    %41 = vmatprep.subr.mxu0 0.0
    %42 = vmatpush1.msra.mxu0 0.0
    %43 = vmatprep.subr.mxu0 0.0
    %44 = vmatpush1.msra.mxu0 0.0
    %45 = vmatprep.subr.mxu0 0.0
    %46 = vmatpush1.msra.mxu0 0.0
    %47 = vmatprep.subr.mxu0 0.0
    %48 = vmatpush1.msra.mxu0 0.0
    %49 = vmatprep.subr.mxu0 0.0
    %50 = vmatpush1.msra.mxu0 0.0
    %51 = vmatprep.subr.mxu0 0.0
    %52 = vmatpush1.msra.mxu0 0.0
    %53 = vmatprep.subr.mxu0 0.0
    %54 = vmatpush1.msra.mxu0 0.0
    %55 = vmatprep.subr.mxu0 0.0
    %56 = vmatpush1.msra.mxu0 0.0
    %57 = vmatprep.subr.mxu0 0.0
    %58 = vmatpush1.msra.mxu0 0.0
    %59 = vmatprep.subr.mxu0 0.0
    %60 = vmatpush1.msra.mxu0 0.0
    %61 = vmatprep.subr.mxu0 0.0
    %62 = vmatpush1.msra.mxu0 0.0
    %63 = vmatprep.subr.mxu0 0.0
    %64 = vmatpush1.msra.mxu0 0.0
    %65 = vmatprep.subr.mxu0 0.0
    %66 = vmatpush1.msra.mxu0 0.0
    %67 = vmatprep.subr.mxu0 0.0
    %68 = vmatpush1.msra.mxu0 0.0
    %69 = vmatprep.subr.mxu0 0.0
    %70 = vmatpush1.msra.mxu0 0.0
    %71 = vmatprep.subr.mxu0 0.0
    %72 = vmatpush1.msra.mxu0 0.0
    %73 = vmatprep.subr.mxu0 0.0
    %74 = vmatpush1.msra.mxu0 0.0
    %75 = vmatprep.subr.mxu0 0.0
    %76 = vmatpush1.msra.mxu0 0.0
    %77 = vmatprep.subr.mxu0 0.0
    %78 = vmatpush1.msra.mxu0 0.0
    %79 = vmatprep.subr.mxu0 0.0
    %80 = vmatpush1.msra.mxu0 0.0
    %81 = vmatprep.subr.mxu0 0.0
    %82 = vmatpush1.msra.mxu0 0.0
    %83 = vmatprep.subr.mxu0 0.0
    %84 = vmatpush1.msra.mxu0 0.0
    %85 = vmatprep.subr.mxu0 0.0
    %86 = vmatpush1.msra.mxu0 0.0
    %87 = vmatprep.subr.mxu0 0.0
    %88 = vmatpush1.msra.mxu0 0.0
    %89 = vmatprep.subr.mxu0 0.0
    %90 = vmatpush1.msra.mxu0 0.0
    %91 = vmatprep.subr.mxu0 0.0
    %92 = vmatpush1.msra.mxu0 0.0
    %93 = vmatprep.subr.mxu0 0.0
    %94 = vmatpush1.msra.mxu0 0.0
    %95 = vmatprep.subr.mxu0 0.0
    %96 = vmatpush1.msra.mxu0 0.0
    %97 = vmatprep.subr.mxu0 0.0
    %98 = vmatpush1.msra.mxu0 0.0
    %99 = vmatprep.subr.mxu0 0.0
    %100 = vmatpush1.msra.mxu0 0.0
    %101 = vmatprep.mubr.f32.mxu0 0.0
    %102 = vmatmul.mubr.f32.gmra.mrb[0].mxu0 %v32
    %v103 = vpop.f32.mrb[0].mxu0
    %v104 = vadd.f32 0.0, %v103
    %v105 = vpop.f32.mrb[0].mxu0
    %106 = vmatprep.mubr.f32.mxu0 0.0
    %107 = vmatmul.mubr.f32.gmra.mrb[0].mxu0 %v35
    %v108 = vpop.f32.mrb[0].mxu0
    %v109 = vadd.f32 0.0, %v108
    %v110 = vpop.f32.mrb[0].mxu0
    %111 = vdwg.mxu0
    %v112 = vld [vmem:[#allocation2] sm:$0xff]
    %v113 = vld [vmem:[#allocation2 + $0x8] sm:$0xff]
    %v114 = vld [vmem:[%s0] sm:$0xf]
    %v115 = vld [vmem:[%s0 + $0x4] sm:$0xf]
    %v116 = vunpack.c.l.bf16 %v114
    %v117 = vunpack.c.l.bf16 %v115
    %vm118 = vcmask 130048
    %v120 = vsel %vm118, %v116, 0
    %v123 = vsel %vm118, %v117, 0
    %125 = vmatprep.subr.mxu0 0.0
    %126 = vmatpush1.msra.mxu0 %v104
    %127 = vmatprep.subr.mxu0 0.0
    %128 = vmatpush1.msra.mxu0 %v109
    %129 = vmatprep.subr.mxu0 0.0
    %130 = vmatpush1.msra.mxu0 0.0
    %131 = vmatprep.subr.mxu0 0.0
    %132 = vmatpush1.msra.mxu0 0.0
    %133 = vmatprep.subr.mxu0 0.0
    %134 = vmatpush1.msra.mxu0 0.0
    %135 = vmatprep.subr.mxu0 0.0
    %136 = vmatpush1.msra.mxu0 0.0
    %137 = vmatprep.subr.mxu0 0.0
    %138 = vmatpush1.msra.mxu0 0.0
    %139 = vmatprep.subr.mxu0 0.0
    %140 = vmatpush1.msra.mxu0 0.0
    %141 = vmatprep.subr.mxu0 0.0
    %142 = vmatpush1.msra.mxu0 0.0
    %143 = vmatprep.subr.mxu0 0.0
    %144 = vmatpush1.msra.mxu0 0.0
    %145 = vmatprep.subr.mxu0 0.0
    %146 = vmatpush1.msra.mxu0 0.0
    %147 = vmatprep.subr.mxu0 0.0
    %148 = vmatpush1.msra.mxu0 0.0
    %149 = vmatprep.subr.mxu0 0.0
    %150 = vmatpush1.msra.mxu0 0.0
    %151 = vmatprep.subr.mxu0 0.0
    %152 = vmatpush1.msra.mxu0 0.0
    %153 = vmatprep.subr.mxu0 0.0
    %154 = vmatpush1.msra.mxu0 0.0
    %155 = vmatprep.subr.mxu0 0.0
    %156 = vmatpush1.msra.mxu0 0.0
    %157 = vmatprep.subr.mxu0 0.0
    %158 = vmatpush1.msra.mxu0 0.0
    %159 = vmatprep.subr.mxu0 0.0
    %160 = vmatpush1.msra.mxu0 0.0
    %161 = vmatprep.subr.mxu0 0.0
    %162 = vmatpush1.msra.mxu0 0.0
    %163 = vmatprep.subr.mxu0 0.0
    %164 = vmatpush1.msra.mxu0 0.0
    %165 = vmatprep.subr.mxu0 0.0
    %166 = vmatpush1.msra.mxu0 0.0
    %167 = vmatprep.subr.mxu0 0.0
    %168 = vmatpush1.msra.mxu0 0.0
    %169 = vmatprep.subr.mxu0 0.0
    %170 = vmatpush1.msra.mxu0 0.0
    %171 = vmatprep.subr.mxu0 0.0
    %172 = vmatpush1.msra.mxu0 0.0
    %173 = vmatprep.subr.mxu0 0.0
    %174 = vmatpush1.msra.mxu0 0.0
    %175 = vmatprep.subr.mxu0 0.0
    %176 = vmatpush1.msra.mxu0 0.0
    %177 = vmatprep.subr.mxu0 0.0
    %178 = vmatpush1.msra.mxu0 0.0
    %179 = vmatprep.subr.mxu0 0.0
    %180 = vmatpush1.msra.mxu0 0.0
    %181 = vmatprep.subr.mxu0 0.0
    %182 = vmatpush1.msra.mxu0 0.0
    %183 = vmatprep.subr.mxu0 0.0
    %184 = vmatpush1.msra.mxu0 0.0
    %185 = vmatprep.subr.mxu0 0.0
    %186 = vmatpush1.msra.mxu0 0.0
    %187 = vmatprep.subr.mxu0 0.0
    %188 = vmatpush1.msra.mxu0 0.0
    %189 = vmatprep.mubr.f32.mxu0 0.0
    %190 = vmatmul.mubr.f32.gmra.mrb[0].mxu0 %v120
    %v191 = vpop.f32.mrb[0].mxu0
    %v192 = vadd.f32 0.0, %v191
    %v193 = vpop.f32.mrb[0].mxu0
    %194 = vmatprep.mubr.f32.mxu0 0.0
    %195 = vmatmul.mubr.f32.gmra.mrb[0].mxu0 %v123
    %v196 = vpop.f32.mrb[0].mxu0
    %v197 = vadd.f32 0.0, %v196
    %v198 = vpop.f32.mrb[0].mxu0
    %199 = vdwg.mxu0
    %v200 = vadd.f32 %v112, %v192
    %v201 = vadd.f32 %v113, %v197
    %202 = vst [vmem:[#allocation2] sm:$0xff] %v200
    %203 = vst [vmem:[#allocation2 + $0x8] sm:$0xff] %v201
    // Predicated region
    $region22: #{tpu_custom_call.1} parent=1 // pred_check
      %p204 = pneg %p21
    $region23: #{tpu_custom_call.1} parent=1 // pred_check_branch
      %206 = sbr.rel (%p204) target = $region25
    $region24: #{tpu_custom_call.1} parent=1 // pred_region
      %v207 = vld [vmem:[#allocation2] sm:$0xff]
      %v208 = vld [vmem:[#allocation2 + $0x8] sm:$0xff]
      %v209 = vld [vmem:[%s3] sm:$0x1]
      %v211 = vlaneseq
      %v212 = vshrl.u32 %v211, 7
      %v213 = vsub.s32 0, %v212
      %v214 = vrot.slane %v209, %v213
      %v216 = vadd.f32 %v207, %v214
      %v217 = vadd.f32 %v208, %v214
      %v218 = vmax.f32 %v216, 0.0
      %v219 = vmax.f32 %v217, 0.0
      %220 = vst [vmem:[#allocation3] sm:$0xff] %v218
      %221 = vst [vmem:[#allocation3 + $0x8] sm:$0xff] %v219
      %v222 = vadd.f32 %v218, %v219
      %v223 = vrot.slane %v222, 4
      %v224 = vadd.f32 %v222, %v223
      %v225 = vrot.slane %v224, 2
      %v226 = vadd.f32 %v224, %v225
      %v227 = vrot.slane %v226, 1
      %v228 = vadd.f32 %v226, %v227
      %229 = vst [vmem:[#allocation5] sm:$0x1] %v228
      %v230 = vmul.f32 %v218, %v218
      %v231 = vmul.f32 %v219, %v219
      %v232 = vadd.f32 %v230, %v231
      %v233 = vrot.slane %v232, 4
      %v234 = vadd.f32 %v232, %v233
      %v235 = vrot.slane %v234, 2
      %v236 = vadd.f32 %v234, %v235
      %v237 = vrot.slane %v236, 1
      %v238 = vadd.f32 %v236, %v237
      %239 = vst [vmem:[#allocation5 + $0x1] sm:$0x1] %v238
    $region25: #{tpu_custom_call.1} parent=1 // pred_fallthru
      _
    // Predicated region
    $region26: #{tpu_custom_call.1} parent=1 // pred_check
      _
    $region27: #{tpu_custom_call.1} parent=1 // pred_check_branch
      %241 = sbr.rel (0) target = $region29
    $region28: #{tpu_custom_call.1} parent=1 // pred_region
      %s243 = ssub.s32 256, 256
      %244 = vsyncadd [#allocation4], %s243
      %s245 = sshll.u32 [#allocation3], 4
      %s246 = int_to_ptr.vmem [resolvable:$true] %s245
      %251 = dma.vmem_to_hbm [thread:$0]  %s246, 256, %s4, [#allocation4], 128, 128, 8
    $region29: #{tpu_custom_call.1} parent=1 // pred_fallthru
      _
    // Predicated region
    $region30: #{tpu_custom_call.1} parent=1 // pred_check
      _
    $region31: #{tpu_custom_call.1} parent=1 // pred_check_branch
      %253 = sbr.rel (0) target = $region33
    $region32: #{tpu_custom_call.1} parent=1 // pred_region
      %s255 = ssub.s32 32, 32
      %256 = vsyncadd [#allocation6], %s255
      %s258 = sshll.u32 [#allocation5], 4
      %s259 = int_to_ptr.vmem [resolvable:$true] %s258
      %261 = dma.vmem_to_hbm [thread:$0]  %s259, 32, %s5, [#allocation6]
    $region33: #{tpu_custom_call.1} parent=1 // pred_fallthru
      _
    // Predicated region
    $region34: #{tpu_custom_call.1} parent=1 // pred_check
      _
    $region35: #{tpu_custom_call.1} parent=1 // pred_check_branch
      %263 = sbr.rel (0) target = $region37
    $region36: #{tpu_custom_call.1} parent=1 // pred_region
      %264 = dma.done [#allocation4], 256
    $region37: #{tpu_custom_call.1} parent=1 // pred_fallthru
      _
    // Predicated region
    $region38: #{tpu_custom_call.1} parent=1 // pred_check
      _
    $region39: #{tpu_custom_call.1} parent=1 // pred_check_branch
      %266 = sbr.rel (0) target = $region41
    $region40: #{tpu_custom_call.1} parent=1 // pred_region
      %267 = dma.done [#allocation6], 32
    $region41: #{tpu_custom_call.1} parent=1 // pred_fallthru
      _
    %268 = vsyncpa [#allocation4], 1
    %269 = vsyncpa [#allocation6], 1

</llo_original>
